<compile_context>
chip_gen: v7x
topology: tpu7x:2x2x1
jax: 0.10.0
libtpu: 0.0.40
codegen_flags: <defaults>
</compile_context>

<pallas_src>
import functools

import jax
import jax.numpy as jnp
from jax.experimental import pallas as pl
from jax.experimental.pallas import tpu as pltpu


def _classification_kernel(x_ref, w_ref, b_ref, o_ref, acc_ref, *, inv_hw):
    # x_ref:   [TB, C, T_HW]       input activation tile
    # w_ref:   [NUM_CLASSES, C]    FC weight (PyTorch layout, no wrapper transpose)
    # b_ref:   [1, NUM_CLASSES]    FC bias (resident; constant block index)
    # o_ref:   [TB, NUM_CLASSES]   output, written only on the last HW step
    # acc_ref: [TB, C]             f32 running channel-sum accumulator (scratch)
    hw_i = pl.program_id(1)

    @pl.when(hw_i == 0)
    def _init():
        acc_ref[...] = jnp.zeros_like(acc_ref)

    # Per-step partial sum over the HW lanes.  Lane-wise tree adds go to the
    # VALU, the final 128->1 reduce to the XLU; both hide under the input DMA.
    acc_ref[...] += jnp.sum(x_ref[...].astype(jnp.float32), axis=-1)

    @pl.when(hw_i == pl.num_programs(1) - 1)
    def _finalize():
        pooled = acc_ref[...] * inv_hw                       # global average pool [TB, C]
        # FC layer on the MXU; contract pooled's C against weight's C.
        logits = jax.lax.dot_general(
            pooled, w_ref[...].astype(jnp.float32),
            dimension_numbers=(((1,), (1,)), ((), ())),
            preferred_element_type=jnp.float32)
        logits = logits + b_ref[...].astype(jnp.float32)
        o_ref[...] = jax.nn.sigmoid(logits).astype(o_ref.dtype)


def _pick_hw_tile(HW, TB, C, itemsize, target_bytes=8 * 1024 * 1024):
    """Return (hw_tile, padded_hw). hw_tile is a multiple of 128 (or full HW)."""
    cap = max(128, (target_bytes // max(1, TB * C * itemsize)) // 128 * 128)
    if HW <= cap:
        return HW, HW                       # single full-HW block
    for t in range(cap, 127, -128):
        if HW % t == 0:                     # largest clean 128-multiple divisor
            return t, HW
    # No clean divisor: zero-pad HW up to a multiple of 128 and tile that.
    padded = ((HW + 127) // 128) * 128
    for t in range(cap, 127, -128):
        if padded % t == 0:
            return t, padded
    return 128, padded                      # unreachable (128 divides padded)


def classification_only(x_nchw, weight, bias, *, hw_tile=None):
    """x_nchw: [B, C, H, W]; weight: [num_classes, C] (PyTorch layout); bias: [num_classes]."""
    B, C, H, W = x_nchw.shape
    num_classes, c_in = weight.shape
    assert c_in == C, "fc in_features must match channel count"
    HW = H * W

    x_flat = x_nchw.reshape(B, C, HW)          # glue reshape in plain JAX
    b2d = bias.reshape(1, num_classes)

    # Batch tile: full batch when small (output block equals the full dim),
    # otherwise tiles of 8 so the "parallel" batch axis can shard across
    # TensorCores (v7x megacore) and adds pipelining depth elsewhere.
    TB = B if B <= 8 else 8
    nb = pl.cdiv(B, TB)

    itemsize = jnp.dtype(x_flat.dtype).itemsize
    if hw_tile is None:
        T_HW, HW_padded = _pick_hw_tile(HW, TB, C, itemsize)
    else:
        T_HW = min(hw_tile, HW)
        if T_HW != HW and (HW % T_HW != 0 or T_HW % 128 != 0):
            T_HW = HW                        # keep exact semantics, single block
        HW_padded = HW
    if HW_padded != HW:
        # Zero padding keeps the mean exact because we divide by the true H*W.
        x_flat = jnp.pad(x_flat, ((0, 0), (0, 0), (0, HW_padded - HW)))
    nh = HW_padded // T_HW

    kernel = functools.partial(_classification_kernel, inv_hw=float(1.0 / HW))

    out = pl.pallas_call(
        kernel,
        out_shape=jax.ShapeDtypeStruct((B, num_classes), x_nchw.dtype),
        grid=(nb, nh),
        in_specs=[
            pl.BlockSpec((TB, C, T_HW), lambda b, h: (b, 0, h)),
            pl.BlockSpec((num_classes, C), lambda b, h: (0, 0)),
            pl.BlockSpec((1, num_classes), lambda b, h: (0, 0)),
        ],
        out_specs=pl.BlockSpec((TB, num_classes), lambda b, h: (b, 0)),
        scratch_shapes=[pltpu.VMEM((TB, C), jnp.float32)],
        compiler_params=pltpu.CompilerParams(
            dimension_semantics=("parallel", "arbitrary"),
            vmem_limit_bytes=32 * 1024 * 1024),
    )(x_flat, weight, b2d)
    return out


if __name__ == "__main__":
    # baseline=True -> fc expects 64 input channels; num_classes=6 (module default)
    B, C, H, W = 2, 64, 16, 16
    NUM_CLASSES = 6

    key = jax.random.PRNGKey(0)
    kx, kw, kb = jax.random.split(key, 3)

    x = jax.random.normal(kx, (B, C, H, W), dtype=jnp.float32)
    # deterministic synthetic Linear(64, 6) parameters (PyTorch layout [out, in])
    bound = 1.0 / (C ** 0.5)
    weight = jax.random.uniform(kw, (NUM_CLASSES, C), minval=-bound, maxval=bound,
                                dtype=jnp.float32)
    bias = jax.random.uniform(kb, (NUM_CLASSES,), minval=-bound, maxval=bound,
                              dtype=jnp.float32)

    # hw_tile=128 -> grid=(1, 2): exercises the multi-step accumulator path.
    out = classification_only(x, weight, bias, hw_tile=128)
    jax.block_until_ready(out)

    # sanity check against plain-JAX reference of the PyTorch semantics
    pooled_ref = jnp.mean(x, axis=(2, 3))                   # AdaptiveAvgPool2d((1,1)) + squeeze
    ref = jax.nn.sigmoid(pooled_ref @ weight.T + bias)      # Linear + Sigmoid
    assert out.shape == (B, NUM_CLASSES)
    assert jnp.allclose(out, ref, atol=1e-5), "mismatch vs reference"

    # also exercise the auto-tiling (single HW block) path
    out2 = classification_only(x, weight, bias)
    jax.block_until_ready(out2)
    assert jnp.allclose(out2, ref, atol=1e-5), "mismatch vs reference (auto tile)"

    print("KERNEL_OK")
</pallas_src>

<mosaic_0001>
module attributes {stable_mosaic.version = 11 : i64} {
  func.func @_classification_kernel(%arg0: i32, %arg1: i32, %arg2: memref<2x64x128xf32, #tpu.memory_space<vmem>>, %arg3: memref<6x64xf32, #tpu.memory_space<vmem>>, %arg4: memref<1x6xf32, #tpu.memory_space<vmem>>, %arg5: memref<2x6xf32, #tpu.memory_space<vmem>>, %arg6: memref<2x64xf32, #tpu.memory_space<vmem>>) attributes {dimension_semantics = [#tpu.dimension_semantics<parallel>, #tpu.dimension_semantics<arbitrary>], iteration_bounds = array<i64: 1, 2>, scalar_prefetch = 0 : i64, scratch_operands = 1 : i64, tpu.core_type = #tpu.core_type<tc>, window_params = [{transform_indices = @transform_0, window_bounds = array<i64: 2, 64, 128>}, {pipeline_mode = #tpu.pipeline_mode<synchronous>, transform_indices = @transform_1, window_bounds = array<i64: 6, 64>}, {pipeline_mode = #tpu.pipeline_mode<synchronous>, transform_indices = @transform_2, window_bounds = array<i64: 1, 6>}, {transform_indices = @transform_3, window_bounds = array<i64: 2, 6>}]} {
    %c0_i32 = arith.constant 0 : i32
    %0 = arith.cmpi eq, %arg1, %c0_i32 : i32
    %1 = arith.extui %0 : i1 to i32
    %c0_i32_0 = arith.constant 0 : i32
    %2 = arith.cmpi ne, %1, %c0_i32_0 : i32
    scf.if %2 {
      %cst_8 = arith.constant 0.000000e+00 : f32
      %11 = vector.broadcast %cst_8 : f32 to vector<2x64xf32>
      %c0_9 = arith.constant 0 : index
      %c0_10 = arith.constant 0 : index
      %12 = vector.load %arg6[%c0_9, %c0_10] : memref<2x64xf32, #tpu.memory_space<vmem>>, vector<2x64xf32>
      tpu.vector_store %arg6[%c0_9, %c0_10], %11 {strides = array<i32>} : memref<2x64xf32, #tpu.memory_space<vmem>>, vector<2x64xf32>,
    } else {
    }
    %c0 = arith.constant 0 : index
    %c0_1 = arith.constant 0 : index
    %3 = vector.load %arg6[%c0, %c0_1] : memref<2x64xf32, #tpu.memory_space<vmem>>, vector<2x64xf32>
    %c0_2 = arith.constant 0 : index
    %c0_3 = arith.constant 0 : index
    %c0_4 = arith.constant 0 : index
    %4 = vector.load %arg2[%c0_2, %c0_3, %c0_4] : memref<2x64x128xf32, #tpu.memory_space<vmem>>, vector<2x64x128xf32>
    %cst = arith.constant dense<0.000000e+00> : vector<2x64xf32>
    %5 = vector.multi_reduction <add>, %4, %cst [2] : vector<2x64x128xf32> to vector<2x64xf32>
    %6 = arith.addf %3, %5 : vector<2x64xf32>
    %c0_5 = arith.constant 0 : index
    %c0_6 = arith.constant 0 : index
    %7 = vector.load %arg6[%c0_5, %c0_6] : memref<2x64xf32, #tpu.memory_space<vmem>>, vector<2x64xf32>
    tpu.vector_store %arg6[%c0_5, %c0_6], %6 {strides = array<i32>} : memref<2x64xf32, #tpu.memory_space<vmem>>, vector<2x64xf32>,
    %c1_i32 = arith.constant 1 : i32
    %8 = arith.cmpi eq, %arg1, %c1_i32 : i32
    %9 = arith.extui %8 : i1 to i32
    %c0_i32_7 = arith.constant 0 : i32
    %10 = arith.cmpi ne, %9, %c0_i32_7 : i32
    scf.if %10 {
      %c0_8 = arith.constant 0 : index
      %c0_9 = arith.constant 0 : index
      %11 = vector.load %arg6[%c0_8, %c0_9] : memref<2x64xf32, #tpu.memory_space<vmem>>, vector<2x64xf32>
      %cst_10 = arith.constant 3.906250e-03 : f32
      %12 = vector.broadcast %cst_10 : f32 to vector<2x64xf32>
      %13 = arith.mulf %11, %12 : vector<2x64xf32>
      %c0_11 = arith.constant 0 : index
      %c0_12 = arith.constant 0 : index
      %14 = vector.load %arg3[%c0_11, %c0_12] : memref<6x64xf32, #tpu.memory_space<vmem>>, vector<6x64xf32>
      %cst_13 = arith.constant dense<0.000000e+00> : vector<2x6xf32>
      %15 = tpu.matmul %13, %14, %cst_13 {dimension_numbers = #tpu.dot_dimension_numbers<[1], [1], [0], [0], [0, 0, 1, 0], [], []>} : vector<2x64xf32>, vector<6x64xf32>, vector<2x6xf32> -> vector<2x6xf32>
      %c0_14 = arith.constant 0 : index
      %c0_15 = arith.constant 0 : index
      %16 = vector.load %arg4[%c0_14, %c0_15] : memref<1x6xf32, #tpu.memory_space<vmem>>, vector<1x6xf32>
      %17 = vector.broadcast %16 : vector<1x6xf32> to vector<2x6xf32>
      %18 = arith.addf %15, %17 : vector<2x6xf32>
      %19 = arith.negf %18 : vector<2x6xf32>
      %20 = math.exp %19 : vector<2x6xf32>
      %cst_16 = arith.constant 1.000000e+00 : f32
      %21 = vector.broadcast %cst_16 : f32 to vector<2x6xf32>
      %22 = arith.addf %21, %20 : vector<2x6xf32>
      %23 = arith.divf %21, %22 : vector<2x6xf32>
      %c0_17 = arith.constant 0 : index
      %c0_18 = arith.constant 0 : index
      %24 = vector.load %arg5[%c0_17, %c0_18] : memref<2x6xf32, #tpu.memory_space<vmem>>, vector<2x6xf32>
      tpu.vector_store %arg5[%c0_17, %c0_18], %23 {strides = array<i32>} : memref<2x6xf32, #tpu.memory_space<vmem>>, vector<2x6xf32>,
    } else {
    }
    return
  }
  func.func @transform_0(%arg0: i32, %arg1: i32) -> (i32, i32, i32) {
    %c0_i32 = arith.constant 0 : i32
    %c0_i32_0 = arith.constant 0 : i32
    return %arg0, %c0_i32, %arg1 : i32, i32, i32
  }
  func.func @transform_1(%arg0: i32, %arg1: i32) -> (i32, i32) {
    %c0_i32 = arith.constant 0 : i32
    %c0_i32_0 = arith.constant 0 : i32
    %c0_i32_1 = arith.constant 0 : i32
    return %c0_i32, %c0_i32_0 : i32, i32
  }
  func.func @transform_2(%arg0: i32, %arg1: i32) -> (i32, i32) {
    %c0_i32 = arith.constant 0 : i32
    %c0_i32_0 = arith.constant 0 : i32
    %c0_i32_1 = arith.constant 0 : i32
    return %c0_i32, %c0_i32_0 : i32, i32
  }
  func.func @transform_3(%arg0: i32, %arg1: i32) -> (i32, i32) {
    %c0_i32 = arith.constant 0 : i32
    %c0_i32_0 = arith.constant 0 : i32
    return %arg0, %c0_i32 : i32, i32
  }
}

</mosaic_0001>

<llo_original>
// kernel: tpu_custom_call.1
$region0: #{tpu_custom_call.1}
  #allocation0 [shape = 'u32[]', space=smem, size = 0x4, offset = 0x4, fixed_abs, tag = 'smem constant byte address 0x4 - core index']
  #allocation1 [shape = 'u32[144,128]{1,0:T(1,128)}', space=vmem, size = 0x12000, scoped, tag = 'internal scratch']
  #allocation2 [shape = 'f32[2,64]{1,0:T(2,128)}', space=vmem, size = 0x400, scoped, tag = 'scratch operand']
  %s0 = inlined_call_operand.hbm [shape: f32[2,64,256], index: 0, kind: input, shape index: {}]
  %s1 = inlined_call_operand.hbm [shape: f32[6,64], index: 1, kind: input, shape index: {}]
  %s2 = inlined_call_operand.vmem [shape: f32[1,6], index: 2, kind: input, shape index: {}]
  %s3 = inlined_call_operand.hbm [shape: f32[2,6], index: 3, kind: output, shape index: {}]
  %s4 = sld [smem:[#allocation0]]
  $region61: #{tpu_custom_call.1} parent=0
    _
  %s6 = ssub.s32 1, %s4
  %s7 = scalar_select 0, %s6, %s4
  $region1: #{tpu_custom_call.1} parent=0
    #allocation3 [shape = 'u8[131072]{0}', space=vmem, size = 0x20000, scoped, tag = 'input window, operand 0']
    #allocation4 [shape = 's32[2]{0}', space=sflag, size = 0x8, scoped, tag = 'scoped memory for tpu_custom_call.1']
    #allocation5 [shape = 's32[2]{0}', space=sflag, size = 0x8, scoped, tag = 'scoped memory for tpu_custom_call.1']
    #allocation6 [shape = 'u8[4096]{0}', space=vmem, size = 0x1000, scoped, tag = 'input window, operand 1, single buffered']
    #allocation7 [shape = 's32[1]{0}', space=sflag, size = 0x4, scoped, tag = 'scoped memory for tpu_custom_call.1']
    #allocation8 [shape = 'u8[1024]{0}', space=vmem, size = 0x400, scoped, tag = 'output window, operand 0, single buffered']
    %8 = vsyncpa [#allocation4], 0
    %s9 = scalar_lea.sflag [#allocation4], 1
    %10 = vsyncpa %s9, 0
    %11 = vsyncpa [#allocation7], 0
    %12 = vsyncpa [#allocation5], 0
    loop: start=0, step=1, limit=4
    $region2: #{tpu_custom_call.1} parent=1 // loop_pre_header
      _
    $region3: #{tpu_custom_call.1} parent=1 // loop_header
      %s14 = sphi 0, %s18
      %p15 = scmp.ge.s32.totalorder %s14, 4
      %s21 = sphi 0, %s33
      %s22 = sphi 0, %s29
      %s23 = sphi 0, %s21
      %s24 = sphi 0, %s22
      %s25 = sphi 0, %s23
      %s26 = sphi 0, %s24
      %s38 = sphi 0, %s40
      %s41 = sphi 0, %s38
      %s42 = sphi 0, %s41
      %s58 = sphi 0, %s42
      %s62 = sphi 0, %s62
      %s64 = sphi 0, %s62
      %s65 = sphi 0, %s64
      %s79 = sphi 0, %s65
      %s83 = sphi 0, %s83
      %s85 = sphi 0, %s83
      %s86 = sphi 0, %s85
      %s100 = sphi 0, %s86
      %s106 = sphi 0, %s108
      %s109 = sphi 0, %s106
      %s110 = sphi 0, %s109
      %s126 = sphi 0, %s110
    $region4: #{tpu_custom_call.1} parent=1 // loop_header_branch
      %17 = sbr.rel (%p15) target = $region8
    $region5: #{tpu_custom_call.1} parent=1 // loop_body
      %s19 = ssub.s32 %s14, 1
      %s20 = ssub.s32 %s14, 2
      %s27 = sadd.s32 1, %s22
      %p28 = scmp.ge.s32.totalorder %s27, 2
      %s29 = scalar_select %p28, 0, %s27
      %s30 = sadd.s32 1, %s21
      %s31 = scalar_select %p28, %s30, %s21
      %p32 = scmp.ge.s32.totalorder %s31, 1
      %s33 = scalar_select %p32, 0, %s31
      %s34 = ssub.s32 %s21, %s33
      %s35 = ssub.s32 %s22, %s29
      %s36 = sor.u32 %s34, %s35
      %p37 = scmp.eq.s32.totalorder %s36, 0
      %s39 = sadd.s32 %s38, 1
      %s40 = scalar_select %p37, %s38, %s39
      %p43 = pneg %p37
      %p44 = scmp.eq.s32.totalorder %s14, 1
      %p45 = por %p43, %p44
      %p46 = scmp.ne.s32.totalorder %s38, %s41
      %p47 = scmp.eq.s32.totalorder %s14, 0
      %p48 = por %p46, %p47
      %p49 = scmp.ne.s32.totalorder %s38, %s41
      %p50 = scmp.eq.s32.totalorder %s19, 1
      %p51 = por %p49, %p50
      %p52 = scmp.ne.s32.totalorder %s41, %s42
      %p53 = scmp.eq.s32.totalorder %s19, 0
      %p54 = por %p52, %p53
      %p55 = scmp.ne.s32.totalorder %s41, %s42
      %p56 = scmp.eq.s32.totalorder %s20, 1
      %p57 = por %p55, %p56
      %p59 = scmp.ne.s32.totalorder %s42, %s58
      %p60 = scmp.eq.s32.totalorder %s20, 0
      %p61 = por %p59, %p60
      %s63 = sadd.s32 %s62, 1
      %p66 = scmp.eq.s32.totalorder %s14, 1
      %p67 = scmp.ne.s32.totalorder %s62, %s64
      %p68 = scmp.eq.s32.totalorder %s14, 0
      %p69 = por %p67, %p68
      %p70 = scmp.ne.s32.totalorder %s62, %s64
      %p71 = scmp.eq.s32.totalorder %s19, 1
      %p72 = por %p70, %p71
      %p73 = scmp.ne.s32.totalorder %s64, %s65
      %p74 = scmp.eq.s32.totalorder %s19, 0
      %p75 = por %p73, %p74
      %p76 = scmp.ne.s32.totalorder %s64, %s65
      %p77 = scmp.eq.s32.totalorder %s20, 1
      %p78 = por %p76, %p77
      %p80 = scmp.ne.s32.totalorder %s65, %s79
      %p81 = scmp.eq.s32.totalorder %s20, 0
      %p82 = por %p80, %p81
      %s84 = sadd.s32 %s83, 1
      %p87 = scmp.eq.s32.totalorder %s14, 1
      %p88 = scmp.ne.s32.totalorder %s83, %s85
      %p89 = scmp.eq.s32.totalorder %s14, 0
      %p90 = por %p88, %p89
      %p91 = scmp.ne.s32.totalorder %s83, %s85
      %p92 = scmp.eq.s32.totalorder %s19, 1
      %p93 = por %p91, %p92
      %p94 = scmp.ne.s32.totalorder %s85, %s86
      %p95 = scmp.eq.s32.totalorder %s19, 0
      %p96 = por %p94, %p95
      %p97 = scmp.ne.s32.totalorder %s85, %s86
      %p98 = scmp.eq.s32.totalorder %s20, 1
      %p99 = por %p97, %p98
      %p101 = scmp.ne.s32.totalorder %s86, %s100
      %p102 = scmp.eq.s32.totalorder %s20, 0
      %p103 = por %p101, %p102
      %s104 = ssub.s32 %s21, %s33
      %p105 = scmp.eq.s32.totalorder %s104, 0
      %s107 = sadd.s32 %s106, 1
      %s108 = scalar_select %p105, %s106, %s107
      %p111 = pneg %p105
      %p112 = scmp.eq.s32.totalorder %s14, 1
      %p113 = por %p111, %p112
      %p114 = scmp.ne.s32.totalorder %s106, %s109
      %p115 = scmp.eq.s32.totalorder %s14, 0
      %p116 = por %p114, %p115
      %p117 = scmp.ne.s32.totalorder %s106, %s109
      %p118 = scmp.eq.s32.totalorder %s19, 1
      %p119 = por %p117, %p118
      %p120 = scmp.ne.s32.totalorder %s109, %s110
      %p121 = scmp.eq.s32.totalorder %s19, 0
      %p122 = por %p120, %p121
      %p123 = scmp.ne.s32.totalorder %s109, %s110
      %p124 = scmp.eq.s32.totalorder %s20, 1
      %p125 = por %p123, %p124
      %p127 = scmp.ne.s32.totalorder %s110, %s126
      %p128 = scmp.eq.s32.totalorder %s20, 0
      %p129 = por %p127, %p128
      %p130 = scmp.le.s32.totalorder 1, %s14
      %p131 = scmp.lt.s32.totalorder %s14, 3
      %p132 = pnand %p130, %p131
      %p133 = pneg %p132
      // Predicated region
      $region9: #{tpu_custom_call.1} parent=5 // pred_check
        _
      $region10: #{tpu_custom_call.1} parent=5 // pred_check_branch
        %135 = sbr.rel (%p132) target = $region12
      $region11: #{tpu_custom_call.1} parent=5 // pred_region
        %s136 = ssub.s32 %s14, 1
        // Predicated region
        $region13: #{tpu_custom_call.1} parent=11 // pred_check
          %p137 = pneg %p75
        $region14: #{tpu_custom_call.1} parent=11 // pred_check_branch
          %139 = sbr.rel (%p137) target = $region16
        $region15: #{tpu_custom_call.1} parent=11 // pred_region
          %s141 = ssub.s32 128, 128
          %142 = vsyncadd [#allocation7], %s141
          %s144 = sshll.u32 [#allocation6], 4
          %s145 = int_to_ptr.vmem [resolvable:$true] %s144
          %147 = dma.hbm_to_vmem [thread:$0]  %s1, 128, %s145, [#allocation7]
        $region16: #{tpu_custom_call.1} parent=11 // pred_fallthru
          _
        // Predicated region
        $region17: #{tpu_custom_call.1} parent=11 // pred_check
          %p148 = pneg %p96
        $region18: #{tpu_custom_call.1} parent=11 // pred_check_branch
          %150 = sbr.rel (%p148) target = $region20
        $region19: #{tpu_custom_call.1} parent=11 // pred_region
          _
        $region20: #{tpu_custom_call.1} parent=11 // pred_fallthru
          _
      $region12: #{tpu_custom_call.1} parent=5 // pred_fallthru
        _
      %p151 = scmp.lt.s32.totalorder %s14, 2
      // Predicated region
      $region21: #{tpu_custom_call.1} parent=5 // pred_check
        %p152 = pneg %p151
      $region22: #{tpu_custom_call.1} parent=5 // pred_check_branch
        %154 = sbr.rel (%p152) target = $region24
      $region23: #{tpu_custom_call.1} parent=5 // pred_region
        // Predicated region
        $region25: #{tpu_custom_call.1} parent=23 // pred_check
          %p155 = pneg %p48
        $region26: #{tpu_custom_call.1} parent=23 // pred_check_branch
          %157 = sbr.rel (%p155) target = $region28
        $region27: #{tpu_custom_call.1} parent=23 // pred_region
          %s158 = sand.u32 %s38, 1
          %s159 = scalar_lea.sflag [#allocation4], %s158
          %s160 = sand.u32 %s38, 1
          %s161 = smul.addr %s160, 128
          %s162 = scalar_lea.vmem [#allocation3], %s161
          %s163 = smul.u32 2, %s21
          %s165 = ssub.s32 2048, 2048
          %166 = vsyncadd %s159, %s165
          %s167 = smul.addr %s163, 16
          %s168 = sadd.s32 %s22, %s167
          %s169 = smul.addr %s168, 128
          %s170 = scalar_lea.hbm %s0, %s169
          %s171 = sshll.u32 %s162, 4
          %s172 = int_to_ptr.vmem [resolvable:$true] %s171
          %177 = dma.hbm_to_vmem [thread:$0]  %s170, 2048, %s172, %s159, 256, 128, 8
        $region28: #{tpu_custom_call.1} parent=23 // pred_fallthru
          _
      $region24: #{tpu_custom_call.1} parent=5 // pred_fallthru
        _
      %p178 = scmp.le.s32.totalorder 1, %s14
      %p179 = scmp.lt.s32.totalorder %s14, 3
      %p180 = pnand %p178, %p179
      %p181 = pneg %p180
      // Predicated region
      $region29: #{tpu_custom_call.1} parent=5 // pred_check
        _
      $region30: #{tpu_custom_call.1} parent=5 // pred_check_branch
        %183 = sbr.rel (%p180) target = $region32
      $region31: #{tpu_custom_call.1} parent=5 // pred_region
        %s184 = ssub.s32 %s14, 1
        %s185 = sand.u32 %s41, 1
        %s186 = scalar_lea.sflag [#allocation4], %s185
        %s187 = sand.u32 %s41, 1
        %s188 = smul.addr %s187, 128
        %s189 = scalar_lea.vmem [#allocation3], %s188
        // Predicated region
        $region33: #{tpu_custom_call.1} parent=31 // pred_check
          %p190 = pneg %p54
        $region34: #{tpu_custom_call.1} parent=31 // pred_check_branch
          %192 = sbr.rel (%p190) target = $region36
        $region35: #{tpu_custom_call.1} parent=31 // pred_region
          %193 = dma.done %s186, 2048
        $region36: #{tpu_custom_call.1} parent=31 // pred_fallthru
          _
        // Predicated region
        $region37: #{tpu_custom_call.1} parent=31 // pred_check
          %p194 = pneg %p75
        $region38: #{tpu_custom_call.1} parent=31 // pred_check_branch
          %196 = sbr.rel (%p194) target = $region40
        $region39: #{tpu_custom_call.1} parent=31 // pred_region
          %197 = dma.done [#allocation7], 128
        $region40: #{tpu_custom_call.1} parent=31 // pred_fallthru
          _
        %s198 = sand.u32 %s41, 1
        %s199 = scalar_lea.sflag [#allocation4], %s198
        %s200 = sand.u32 %s41, 1
        %s201 = smul.addr %s200, 128
        %s202 = scalar_lea.vmem [#allocation3], %s201
        %p203 = pneg %p54
        %p204 = pneg %p51
        %p205 = pneg %p75
        %p206 = pneg %p72
        %p207 = pneg %p96
        %p208 = pneg %p93
        %p209 = pneg %p122
        %p210 = pneg %p119
        %s211 = smul.u32 2, %s23
        %p212 = scmp.eq.s32.totalorder %s24, 0
        // Predicated region
        $region41: #{tpu_custom_call.1} parent=31 // pred_check
          %p213 = pneg %p212
        $region42: #{tpu_custom_call.1} parent=31 // pred_check_branch
          %215 = sbr.rel (%p213) target = $region44
        $region43: #{tpu_custom_call.1} parent=31 // pred_region
          %vm216 = vcmask 517120
          %217 = vst.msk [vmem:[#allocation2] sm:$0x3] %vm216, 0.0
        $region44: #{tpu_custom_call.1} parent=31 // pred_fallthru
          _
        %v218 = vld [vmem:[#allocation2] sm:$0x3]
        %v219 = vld [vmem:[%s189] sm:$0xff]
        %v220 = vld [vmem:[%s189 + $0x8] sm:$0xff]
        %v221 = vld [vmem:[%s189 + $0x10] sm:$0xff]
        %v222 = vld [vmem:[%s189 + $0x18] sm:$0xff]
        %v223 = vld [vmem:[%s189 + $0x20] sm:$0xff]
        %v224 = vld [vmem:[%s189 + $0x28] sm:$0xff]
        %v225 = vld [vmem:[%s189 + $0x30] sm:$0xff]
        %v226 = vld [vmem:[%s189 + $0x38] sm:$0xff]
        %v227 = vld [vmem:[%s189 + $0x40] sm:$0xff]
        %v228 = vld [vmem:[%s189 + $0x48] sm:$0xff]
        %v229 = vld [vmem:[%s189 + $0x50] sm:$0xff]
        %v230 = vld [vmem:[%s189 + $0x58] sm:$0xff]
        %v231 = vld [vmem:[%s189 + $0x60] sm:$0xff]
        %v232 = vld [vmem:[%s189 + $0x68] sm:$0xff]
        %v233 = vld [vmem:[%s189 + $0x70] sm:$0xff]
        %v234 = vld [vmem:[%s189 + $0x78] sm:$0xff]
        %235 = vadd.xlane.f32.xlu0 %v219
        %v236 = vpop.xlane.xlu0 %235
        %237 = vadd.xlane.f32.xlu0 %v220
        %v238 = vpop.xlane.xlu0 %237
        %239 = vadd.xlane.f32.xlu0 %v221
        %v240 = vpop.xlane.xlu0 %239
        %241 = vadd.xlane.f32.xlu0 %v222
        %v242 = vpop.xlane.xlu0 %241
        %243 = vadd.xlane.f32.xlu0 %v223
        %v244 = vpop.xlane.xlu0 %243
        %245 = vadd.xlane.f32.xlu0 %v224
        %v246 = vpop.xlane.xlu0 %245
        %247 = vadd.xlane.f32.xlu0 %v225
        %v248 = vpop.xlane.xlu0 %247
        %249 = vadd.xlane.f32.xlu0 %v226
        %v250 = vpop.xlane.xlu0 %249
        %251 = vadd.xlane.f32.xlu0 %v227
        %v252 = vpop.xlane.xlu0 %251
        %253 = vadd.xlane.f32.xlu0 %v228
        %v254 = vpop.xlane.xlu0 %253
        %255 = vadd.xlane.f32.xlu0 %v229
        %v256 = vpop.xlane.xlu0 %255
        %257 = vadd.xlane.f32.xlu0 %v230
        %v258 = vpop.xlane.xlu0 %257
        %259 = vadd.xlane.f32.xlu0 %v231
        %v260 = vpop.xlane.xlu0 %259
        %261 = vadd.xlane.f32.xlu0 %v232
        %v262 = vpop.xlane.xlu0 %261
        %263 = vadd.xlane.f32.xlu0 %v233
        %v264 = vpop.xlane.xlu0 %263
        %265 = vadd.xlane.f32.xlu0 %v234
        %v266 = vpop.xlane.xlu0 %265
        %v283 = vlaneseq
        %v284 = vand.u32 %v283, 127
        %v285 = vlaneseq
        %v286 = vshrl.u32 %v285, 7
        %v287 = vsub.s32 %v284, %v286
        %v288 = vrot.slane %v236, %v287
        %v289 = vadd.s32 %v284, 4294967288
        %v290 = vlaneseq
        %v291 = vshrl.u32 %v290, 7
        %v292 = vsub.s32 %v289, %v291
        %v293 = vrot.slane %v238, %v292
        %vm294 = vcmask 130112
        %v295 = vsel %vm294, %v293, %v288
        %v296 = vadd.s32 %v284, 4294967280
        %v297 = vlaneseq
        %v298 = vshrl.u32 %v297, 7
        %v299 = vsub.s32 %v296, %v298
        %v300 = vrot.slane %v240, %v299
        %vm301 = vcmask 195712
        %v302 = vsel %vm301, %v300, %v295
        %v303 = vadd.s32 %v284, 4294967272
        %v304 = vlaneseq
        %v305 = vshrl.u32 %v304, 7
        %v306 = vsub.s32 %v303, %v305
        %v307 = vrot.slane %v242, %v306
        %vm308 = vcmask 261312
        %v309 = vsel %vm308, %v307, %v302
        %v310 = vadd.s32 %v284, 4294967264
        %v311 = vlaneseq
        %v312 = vshrl.u32 %v311, 7
        %v313 = vsub.s32 %v310, %v312
        %v314 = vrot.slane %v244, %v313
        %vm315 = vcmask 326912
        %v316 = vsel %vm315, %v314, %v309
        %v317 = vadd.s32 %v284, 4294967256
        %v318 = vlaneseq
        %v319 = vshrl.u32 %v318, 7
        %v320 = vsub.s32 %v317, %v319
        %v321 = vrot.slane %v246, %v320
        %vm322 = vcmask 392512
        %v323 = vsel %vm322, %v321, %v316
        %v324 = vadd.s32 %v284, 4294967248
        %v325 = vlaneseq
        %v326 = vshrl.u32 %v325, 7
        %v327 = vsub.s32 %v324, %v326
        %v328 = vrot.slane %v248, %v327
        %vm329 = vcmask 458112
        %v330 = vsel %vm329, %v328, %v323
        %v331 = vadd.s32 %v284, 4294967240
        %v332 = vlaneseq
        %v333 = vshrl.u32 %v332, 7
        %v334 = vsub.s32 %v331, %v333
        %v335 = vrot.slane %v250, %v334
        %vm336 = vcmask 523712
        %v337 = vsel %vm336, %v335, %v330
        %v338 = vlaneseq
        %v339 = vshrl.u32 %v338, 7
        %v340 = vsub.s32 %v284, %v339
        %v341 = vrot.slane %v252, %v340
        %v342 = vlaneseq
        %v343 = vshrl.u32 %v342, 7
        %v344 = vsub.s32 %v289, %v343
        %v345 = vrot.slane %v254, %v344
        %v346 = vsel %vm294, %v345, %v341
        %v347 = vlaneseq
        %v348 = vshrl.u32 %v347, 7
        %v349 = vsub.s32 %v296, %v348
        %v350 = vrot.slane %v256, %v349
        %v351 = vsel %vm301, %v350, %v346
        %v352 = vlaneseq
        %v353 = vshrl.u32 %v352, 7
        %v354 = vsub.s32 %v303, %v353
        %v355 = vrot.slane %v258, %v354
        %v356 = vsel %vm308, %v355, %v351
        %v357 = vlaneseq
        %v358 = vshrl.u32 %v357, 7
        %v359 = vsub.s32 %v310, %v358
        %v360 = vrot.slane %v260, %v359
        %v361 = vsel %vm315, %v360, %v356
        %v362 = vlaneseq
        %v363 = vshrl.u32 %v362, 7
        %v364 = vsub.s32 %v317, %v363
        %v365 = vrot.slane %v262, %v364
        %v366 = vsel %vm322, %v365, %v361
        %v367 = vlaneseq
        %v368 = vshrl.u32 %v367, 7
        %v369 = vsub.s32 %v324, %v368
        %v370 = vrot.slane %v264, %v369
        %v371 = vsel %vm329, %v370, %v366
        %v372 = vlaneseq
        %v373 = vshrl.u32 %v372, 7
        %v374 = vsub.s32 %v331, %v373
        %v375 = vrot.slane %v266, %v374
        %v376 = vsel %vm336, %v375, %v371
        %vm377 = vcmask 1041409
        %v378 = vsel %vm377, %v376, %v337
        %v380 = vadd.f32 %v218, %v378
        %vm381 = vcmask 517120
        %382 = vst.msk [vmem:[#allocation2] sm:$0x3] %vm381, %v380
        %p383 = scmp.eq.s32.totalorder %s24, 1
        // Predicated region
        $region45: #{tpu_custom_call.1} parent=31 // pred_check
          %p384 = pneg %p383
        $region46: #{tpu_custom_call.1} parent=31 // pred_check_branch
          %386 = sbr.rel (%p384) target = $region48
        $region47: #{tpu_custom_call.1} parent=31 // pred_region
          %v387 = vld [vmem:[#allocation2] sm:$0x3]
          %v388 = vmul.f32 %v387, 0.00390625
          %v389 = vld [vmem:[#allocation6] sm:$0x3f]
          %v390 = vld [vmem:[%s2] sm:$0x1]
          %v392 = vlaneseq
          %v393 = vshrl.u32 %v392, 7
          %v394 = vsub.s32 0, %v393
          %v395 = vrot.slane %v390, %v394
          %vm397 = vcmask 523264
          %v399 = vsel %vm397, %v388, 0
          %v402 = vsel %vm397, %v389, 0
          %404 = vmatprep.subr.mxu0 0.0
          %405 = vmatpush1.xpose.msra.mxu0 %v402
          %406 = vmatprep.subr.mxu0 0.0
          %407 = vmatpush1.xpose.msra.mxu0 0.0
          %408 = vmatprep.subr.mxu0 0.0
          %409 = vmatpush1.xpose.msra.mxu0 0.0
          %410 = vmatprep.subr.mxu0 0.0
          %411 = vmatpush1.xpose.msra.mxu0 0.0
          %412 = vmatprep.subr.mxu0 0.0
          %413 = vmatpush1.xpose.msra.mxu0 0.0
          %414 = vmatprep.subr.mxu0 0.0
          %415 = vmatpush1.xpose.msra.mxu0 0.0
          %416 = vmatprep.subr.mxu0 0.0
          %417 = vmatpush1.xpose.msra.mxu0 0.0
          %418 = vmatprep.subr.mxu0 0.0
          %419 = vmatpush1.xpose.msra.mxu0 0.0
          %420 = vmatprep.subr.mxu0 0.0
          %421 = vmatpush1.xpose.msra.mxu0 0.0
          %422 = vmatprep.subr.mxu0 0.0
          %423 = vmatpush1.xpose.msra.mxu0 0.0
          %424 = vmatprep.subr.mxu0 0.0
          %425 = vmatpush1.xpose.msra.mxu0 0.0
          %426 = vmatprep.subr.mxu0 0.0
          %427 = vmatpush1.xpose.msra.mxu0 0.0
          %428 = vmatprep.subr.mxu0 0.0
          %429 = vmatpush1.xpose.msra.mxu0 0.0
          %430 = vmatprep.subr.mxu0 0.0
          %431 = vmatpush1.xpose.msra.mxu0 0.0
          %432 = vmatprep.subr.mxu0 0.0
          %433 = vmatpush1.xpose.msra.mxu0 0.0
          %434 = vmatprep.subr.mxu0 0.0
          %435 = vmatpush1.xpose.msra.mxu0 0.0
          %436 = vmatprep.subr.mxu0 0.0
          %437 = vmatpush1.xpose.msra.mxu0 0.0
          %438 = vmatprep.subr.mxu0 0.0
          %439 = vmatpush1.xpose.msra.mxu0 0.0
          %440 = vmatprep.subr.mxu0 0.0
          %441 = vmatpush1.xpose.msra.mxu0 0.0
          %442 = vmatprep.subr.mxu0 0.0
          %443 = vmatpush1.xpose.msra.mxu0 0.0
          %444 = vmatprep.subr.mxu0 0.0
          %445 = vmatpush1.xpose.msra.mxu0 0.0
          %446 = vmatprep.subr.mxu0 0.0
          %447 = vmatpush1.xpose.msra.mxu0 0.0
          %448 = vmatprep.subr.mxu0 0.0
          %449 = vmatpush1.xpose.msra.mxu0 0.0
          %450 = vmatprep.subr.mxu0 0.0
          %451 = vmatpush1.xpose.msra.mxu0 0.0
          %452 = vmatprep.subr.mxu0 0.0
          %453 = vmatpush1.xpose.msra.mxu0 0.0
          %454 = vmatprep.subr.mxu0 0.0
          %455 = vmatpush1.xpose.msra.mxu0 0.0
          %456 = vmatprep.subr.mxu0 0.0
          %457 = vmatpush1.xpose.msra.mxu0 0.0
          %458 = vmatprep.subr.mxu0 0.0
          %459 = vmatpush1.xpose.msra.mxu0 0.0
          %460 = vmatprep.subr.mxu0 0.0
          %461 = vmatpush1.xpose.msra.mxu0 0.0
          %462 = vmatprep.subr.mxu0 0.0
          %463 = vmatpush1.xpose.msra.mxu0 0.0
          %464 = vmatprep.subr.mxu0 0.0
          %465 = vmatpush1.xpose.msra.mxu0 0.0
          %466 = vmatprep.subr.mxu0 0.0
          %467 = vmatpush1.xpose.msra.mxu0 0.0
          %468 = vmatprep.mubr.f32.mxu0 0.0
          %469 = vmatmul.mubr.f32.gmra.mrb[0].mxu0 %v399
          %v470 = vpop.f32.mrb[0].mxu0
          %v471 = vadd.f32 %v395, %v470
          %v472 = vpop.f32.mrb[0].mxu0
          %473 = vdwg.mxu0
          %v474 = vxor.u32 %v471, 2147483648
          %v475 = vmul.f32 %v474, 1.442695
          %v476 = vpow.pop %v475
          %v477 = vadd.f32 %v476, 1.0
          %v478 = vrcp.pop %v477
          %v479 = vmul.f32 1.0, %v478
          %vm480 = vcmask 41984
          %481 = vst.msk [vmem:[#allocation8] sm:$0x3] %vm480, %v479
        $region48: #{tpu_custom_call.1} parent=31 // pred_fallthru
          _
        // Predicated region
        $region49: #{tpu_custom_call.1} parent=31 // pred_check
          %p482 = pneg %p119
        $region50: #{tpu_custom_call.1} parent=31 // pred_check_branch
          %484 = sbr.rel (%p482) target = $region52
        $region51: #{tpu_custom_call.1} parent=31 // pred_region
          %s486 = ssub.s32 32, 32
          %487 = vsyncadd [#allocation5], %s486
          %s488 = smul.addr %s23, 32
          %s489 = scalar_lea.hbm %s3, %s488
          %s491 = sshll.u32 [#allocation8], 4
          %s492 = int_to_ptr.vmem [resolvable:$true] %s491
          %494 = dma.vmem_to_hbm [thread:$0]  %s492, 32, %s489, [#allocation5]
        $region52: #{tpu_custom_call.1} parent=31 // pred_fallthru
          _
        // Predicated region
        $region53: #{tpu_custom_call.1} parent=31 // pred_check
          %p495 = pneg %p119
        $region54: #{tpu_custom_call.1} parent=31 // pred_check_branch
          %497 = sbr.rel (%p495) target = $region56
        $region55: #{tpu_custom_call.1} parent=31 // pred_region
          %498 = dma.done [#allocation5], 32
        $region56: #{tpu_custom_call.1} parent=31 // pred_fallthru
          _
      $region32: #{tpu_custom_call.1} parent=5 // pred_fallthru
        _
      %p499 = scmp.le.s32.totalorder 2, %s14
      // Predicated region
      $region57: #{tpu_custom_call.1} parent=5 // pred_check
        %p500 = pneg %p499
      $region58: #{tpu_custom_call.1} parent=5 // pred_check_branch
        %502 = sbr.rel (%p500) target = $region60
      $region59: #{tpu_custom_call.1} parent=5 // pred_region
        %s503 = ssub.s32 %s14, 2
      $region60: #{tpu_custom_call.1} parent=5 // pred_fallthru
        _
    $region6: #{tpu_custom_call.1} parent=1 // loop_footer
      %s18 = sadd.s32 1, %s14
    $region7: #{tpu_custom_call.1} parent=1 // loop_footer_branch
      %13 = sbr.rel target = $region3
    $region8: #{tpu_custom_call.1} parent=1 // loop_exit
      _
    %504 = vsyncpa [#allocation4], 1
    %s505 = scalar_lea.sflag [#allocation4], 1
    %506 = vsyncpa %s505, 1
    %507 = vsyncpa [#allocation7], 1
    %508 = vsyncpa [#allocation5], 1
    %s509 = scalar_lea.sflag [#allocation5], 1
    %510 = vsyncpa %s509, 1

</llo_original>
